<compile_context>
chip_gen: v5e
topology: v5e:2x2
jax: 0.10.0
libtpu: 0.0.40
codegen_flags: <defaults>
</compile_context>

<pallas_src>
import functools
import math

import jax
import jax.numpy as jnp
from jax.experimental import pallas as pl
from jax.experimental.pallas import tpu as pltpu

NEG_INF = -1e9
LN_EPS = 1e-5
_VMEM_LIMIT = 48 * 1024 * 1024   # below v7x 64 MiB physical, above v6e 32 MiB scoped default


# ----------------------------------------------------------------------------
# small helpers
# ----------------------------------------------------------------------------
def _round_up(x, m):
    return ((x + m - 1) // m) * m


def _pad_seq_len(s):
    """Internal padded sequence length: 16-aligned (bf16 sublane packing),
    128-aligned once sequences are long enough to be flash-tiled."""
    return _round_up(s, 16) if s <= 128 else _round_up(s, 128)


def _choose_row_tile(m, target, align=16):
    """(tile, padded_m) for a row (sublane) dimension."""
    if m <= target:
        mp = _round_up(m, align)
        return mp, mp
    for t in range(target, align - 1, -align):
        if m % t == 0:
            return t, m
    return target, _round_up(m, target)


def _pick_div_tile(n, target, align=128):
    """Largest multiple of `align` <= target dividing n (n multiple of align)."""
    if n <= target:
        return n
    for t in range(target, align - 1, -align):
        if n % t == 0:
            return t
    return align


# ----------------------------------------------------------------------------
# Pallas kernels
# ----------------------------------------------------------------------------
def _head_proj_kernel(*refs, n_out):
    """Per (batch, head) grid step: project x (Sp, D) with n_out per-head weight
    sets (D, Dh) -> n_out head-major outputs (Sp, Dh)."""
    x_ref = refs[0]
    w_refs = refs[1:1 + n_out]
    b_refs = refs[1 + n_out:1 + 2 * n_out]
    o_refs = refs[1 + 2 * n_out:]
    x = x_ref[0]                                         # (Sp, D) bf16
    for w_r, b_r, o_r in zip(w_refs, b_refs, o_refs):
        y = jnp.dot(x, w_r[0], preferred_element_type=jnp.float32) + b_r[0]
        o_r[0, 0] = y.astype(o_r.dtype)


def _flash_attn_kernel(*refs, kv_len, padded_len, has_mask):
    """Flash attention for one (b, h, q-block); kv blocks reduced on grid axis 3."""
    if has_mask:
        q_ref, k_ref, v_ref, mask_ref, o_ref, m_sc, l_sc, acc_sc = refs
    else:
        q_ref, k_ref, v_ref, o_ref, m_sc, l_sc, acc_sc = refs
        mask_ref = None

    ki = pl.program_id(3)

    @pl.when(ki == 0)
    def _():
        m_sc[...] = jnp.full(m_sc.shape, -jnp.inf, m_sc.dtype)
        l_sc[...] = jnp.zeros(l_sc.shape, l_sc.dtype)
        acc_sc[...] = jnp.zeros(acc_sc.shape, acc_sc.dtype)

    q = q_ref[0, 0]                                      # (tq, Dh) bf16 (scale folded into Wq)
    k = k_ref[0, 0]                                      # (tk, Dh) bf16
    v = v_ref[0, 0]                                      # (tk, Dh) bf16
    s = jax.lax.dot_general(q, k, (((1,), (1,)), ((), ())),
                            preferred_element_type=jnp.float32)   # (tq, tk)
    if has_mask:
        s = s + mask_ref[0].astype(jnp.float32)
    if padded_len != kv_len:   # mask structurally padded key positions (in-kernel, no DMA)
        tk = s.shape[1]
        col = ki * tk + jax.lax.broadcasted_iota(jnp.int32, s.shape, 1)
        s = jnp.where(col < kv_len, s, NEG_INF)

    m_prev = m_sc[...]
    m_new = jnp.maximum(m_prev, jnp.max(s, axis=-1, keepdims=True))
    alpha = jnp.exp(m_prev - m_new)
    p = jnp.exp(s - m_new)
    l_sc[...] = alpha * l_sc[...] + jnp.sum(p, axis=-1, keepdims=True)
    acc_sc[...] = alpha * acc_sc[...] + jnp.dot(p.astype(v.dtype), v,
                                                preferred_element_type=jnp.float32)
    m_sc[...] = m_new

    @pl.when(ki == pl.num_programs(3) - 1)
    def _():
        o_ref[0, 0] = (acc_sc[...] *
                       pl.reciprocal(l_sc[...], approx=True)).astype(o_ref.dtype)


def _attn_out_ln_kernel(o_hm_ref, wo_ref, bo_ref, res_ref, g_ref, be_ref,
                        y_ref, acc_ref, *, eps):
    """Out-projection as a reduction over heads (grid axis 1) + fused
    residual-add + LayerNorm in the epilogue."""
    h = pl.program_id(1)

    @pl.when(h == 0)
    def _():
        acc_ref[...] = jnp.zeros_like(acc_ref)

    acc_ref[...] += jnp.dot(o_hm_ref[0, 0], wo_ref[0],
                            preferred_element_type=jnp.float32)

    @pl.when(h == pl.num_programs(1) - 1)
    def _():
        y = acc_ref[...] + bo_ref[...] + res_ref[0].astype(jnp.float32)
        mean = jnp.mean(y, axis=-1, keepdims=True)
        var = jnp.mean((y - mean) ** 2, axis=-1, keepdims=True)
        y = (y - mean) * jax.lax.rsqrt(var + eps)
        y_ref[0] = (y * g_ref[...] + be_ref[...]).astype(y_ref.dtype)


def _ffn_ln_kernel(x_ref, w1_ref, b1_ref, w2_ref, b2_ref, res_ref, g_ref, be_ref,
                   o_ref, *, eps):
    """Fused FFN: relu(x@W1+b1)@W2+b2 + residual -> LayerNorm (intermediate stays
    in VMEM, never round-trips HBM)."""
    h = jnp.dot(x_ref[...], w1_ref[...], preferred_element_type=jnp.float32) + b1_ref[...]
    h = jnp.maximum(h, 0.0).astype(jnp.bfloat16)
    y = jnp.dot(h, w2_ref[...], preferred_element_type=jnp.float32) + b2_ref[...]
    y = y + res_ref[...].astype(jnp.float32)
    mean = jnp.mean(y, axis=-1, keepdims=True)
    var = jnp.mean((y - mean) ** 2, axis=-1, keepdims=True)
    y = (y - mean) * jax.lax.rsqrt(var + eps)
    o_ref[...] = (y * g_ref[...] + be_ref[...]).astype(o_ref.dtype)


def _linear_kernel(x_ref, w_ref, b_ref, o_ref, acc_ref):
    """Generic tiled y = x @ w + b with f32 accumulator (final vocab projection)."""
    @pl.when(pl.program_id(2) == 0)
    def _():
        acc_ref[...] = jnp.zeros_like(acc_ref)

    acc_ref[...] += jnp.dot(x_ref[...], w_ref[...],
                            preferred_element_type=jnp.float32)

    @pl.when(pl.program_id(2) == pl.num_programs(2) - 1)
    def _():
        o_ref[...] = (acc_ref[...] + b_ref[...]).astype(o_ref.dtype)


# ----------------------------------------------------------------------------
# Pallas wrappers
# ----------------------------------------------------------------------------
def pallas_head_proj(x, ws, bs):
    """x: (B, Sp, D) bf16; ws: tuple of (H, D, Dh) bf16; bs: tuple of (H, 1, Dh) f32.
    Returns tuple of (B, H, Sp, Dh) bf16 head-major projections."""
    B, Sp, D = x.shape
    H, _, Dh = ws[0].shape
    n = len(ws)

    in_specs = ([pl.BlockSpec((1, Sp, D), lambda b, h: (b, 0, 0))] +
                [pl.BlockSpec((1, D, Dh), lambda b, h: (h, 0, 0))] * n +
                [pl.BlockSpec((1, 1, Dh), lambda b, h: (h, 0, 0))] * n)
    out_specs = tuple(pl.BlockSpec((1, 1, Sp, Dh), lambda b, h: (b, h, 0, 0))
                      for _ in range(n))
    out_shape = tuple(jax.ShapeDtypeStruct((B, H, Sp, Dh), jnp.bfloat16)
                      for _ in range(n))

    res = pl.pallas_call(
        functools.partial(_head_proj_kernel, n_out=n),
        out_shape=out_shape,
        grid=(B, H),
        in_specs=in_specs,
        out_specs=out_specs,
        compiler_params=pltpu.CompilerParams(
            dimension_semantics=("parallel", "parallel")),
    )(x, *ws, *bs)
    if not isinstance(res, (tuple, list)):
        res = (res,)
    return tuple(res)


def pallas_flash_attention(q, k, v, mask, kv_len):
    """q, k, v: (B, H, Sp, Dh) bf16; mask: (B, Sp, Sp) bf16 additive or None;
    kv_len: true (unpadded) key length.  Returns (B, H, Sp, Dh) bf16."""
    B, H, Sp, Dh = q.shape
    tq = Sp if Sp <= 128 else 128
    tk = tq
    nq, nk = Sp // tq, Sp // tk
    has_mask = mask is not None

    in_specs = [
        pl.BlockSpec((1, 1, tq, Dh), lambda b, h, qi, ki: (b, h, qi, 0)),
        pl.BlockSpec((1, 1, tk, Dh), lambda b, h, qi, ki: (b, h, ki, 0)),
        pl.BlockSpec((1, 1, tk, Dh), lambda b, h, qi, ki: (b, h, ki, 0)),
    ]
    args = [q, k, v]
    if has_mask:
        in_specs.append(pl.BlockSpec((1, tq, tk), lambda b, h, qi, ki: (b, qi, ki)))
        args.append(mask)

    return pl.pallas_call(
        functools.partial(_flash_attn_kernel, kv_len=kv_len, padded_len=Sp,
                          has_mask=has_mask),
        out_shape=jax.ShapeDtypeStruct((B, H, Sp, Dh), jnp.bfloat16),
        grid=(B, H, nq, nk),
        in_specs=in_specs,
        out_specs=pl.BlockSpec((1, 1, tq, Dh), lambda b, h, qi, ki: (b, h, qi, 0)),
        scratch_shapes=[pltpu.VMEM((tq, 1), jnp.float32),
                        pltpu.VMEM((tq, 1), jnp.float32),
                        pltpu.VMEM((tq, Dh), jnp.float32)],
        compiler_params=pltpu.CompilerParams(
            dimension_semantics=("parallel", "parallel", "parallel", "arbitrary")),
    )(*args)


def pallas_attn_out_ln(attn_hm, wo, bo, residual, gamma, beta, eps=LN_EPS):
    """attn_hm: (B, H, Sp, Dh) bf16; wo: (H, Dh, D) bf16; bo/gamma/beta: (1, D) f32;
    residual: (B, Sp, D) bf16.  Returns LayerNorm(attn_out + residual) bf16."""
    B, H, Sp, Dh = attn_hm.shape
    D = wo.shape[2]
    return pl.pallas_call(
        functools.partial(_attn_out_ln_kernel, eps=eps),
        out_shape=jax.ShapeDtypeStruct((B, Sp, D), jnp.bfloat16),
        grid=(B, H),
        in_specs=[
            pl.BlockSpec((1, 1, Sp, Dh), lambda b, h: (b, h, 0, 0)),
            pl.BlockSpec((1, Dh, D), lambda b, h: (h, 0, 0)),
            pl.BlockSpec((1, D), lambda b, h: (0, 0)),
            pl.BlockSpec((1, Sp, D), lambda b, h: (b, 0, 0)),
            pl.BlockSpec((1, D), lambda b, h: (0, 0)),
            pl.BlockSpec((1, D), lambda b, h: (0, 0)),
        ],
        out_specs=pl.BlockSpec((1, Sp, D), lambda b, h: (b, 0, 0)),
        scratch_shapes=[pltpu.VMEM((Sp, D), jnp.float32)],
        compiler_params=pltpu.CompilerParams(
            dimension_semantics=("parallel", "arbitrary")),
    )(attn_hm, wo, bo, residual, gamma, beta)


def pallas_ffn_ln(x, w1, b1, w2, b2, residual, gamma, beta, eps=LN_EPS,
                  tm_target=256):
    """Fused FFN + residual + LayerNorm.  x/residual: (B, Sp, D) bf16."""
    B, Sp, D = x.shape
    F = w1.shape[1]
    M = B * Sp
    x2 = x.reshape(M, D)
    r2 = residual.reshape(M, D)
    tm, Mp = _choose_row_tile(M, tm_target, 16)
    if Mp != M:  # activation-row padding only
        x2 = jnp.pad(x2, ((0, Mp - M), (0, 0)))
        r2 = jnp.pad(r2, ((0, Mp - M), (0, 0)))

    out = pl.pallas_call(
        functools.partial(_ffn_ln_kernel, eps=eps),
        out_shape=jax.ShapeDtypeStruct((Mp, D), jnp.bfloat16),
        grid=(Mp // tm,),
        in_specs=[
            pl.BlockSpec((tm, D), lambda i: (i, 0)),
            pl.BlockSpec((D, F), lambda i: (0, 0)),
            pl.BlockSpec((1, F), lambda i: (0, 0)),
            pl.BlockSpec((F, D), lambda i: (0, 0)),
            pl.BlockSpec((1, D), lambda i: (0, 0)),
            pl.BlockSpec((tm, D), lambda i: (i, 0)),
            pl.BlockSpec((1, D), lambda i: (0, 0)),
            pl.BlockSpec((1, D), lambda i: (0, 0)),
        ],
        out_specs=pl.BlockSpec((tm, D), lambda i: (i, 0)),
        compiler_params=pltpu.CompilerParams(
            dimension_semantics=("parallel",),
            vmem_limit_bytes=_VMEM_LIMIT),
    )(x2, w1, b1, w2, b2, r2, gamma, beta)

    out = out[:M] if Mp != M else out
    return out.reshape(B, Sp, D)


def pallas_linear(x2d, w, b, out_dtype=jnp.float32,
                  tm_target=256, tn_target=512, tk_target=512):
    """Tiled y = x @ w + b (used for the final vocab projection).
    x2d: (M, K) bf16, w: (K, N) bf16, b: (1, N) f32."""
    M, K = x2d.shape
    N = w.shape[1]

    tm, Mp = _choose_row_tile(M, tm_target, 16)
    if Mp != M:
        x2d = jnp.pad(x2d, ((0, Mp - M), (0, 0)))
    tk = _pick_div_tile(K, tk_target) if K % 128 == 0 else K
    tn = _pick_div_tile(N, tn_target) if N % 128 == 0 else N

    out = pl.pallas_call(
        _linear_kernel,
        out_shape=jax.ShapeDtypeStruct((Mp, N), out_dtype),
        grid=(Mp // tm, N // tn, K // tk),
        in_specs=[
            pl.BlockSpec((tm, tk), lambda i, j, k: (i, k)),
            pl.BlockSpec((tk, tn), lambda i, j, k: (k, j)),
            pl.BlockSpec((1, tn), lambda i, j, k: (0, j)),
        ],
        out_specs=pl.BlockSpec((tm, tn), lambda i, j, k: (i, j)),
        scratch_shapes=[pltpu.VMEM((tm, tn), jnp.float32)],
        compiler_params=pltpu.CompilerParams(
            dimension_semantics=("parallel", "parallel", "arbitrary"),
            vmem_limit_bytes=_VMEM_LIMIT),
    )(x2d, w, b)

    return out[:M] if Mp != M else out


# ----------------------------------------------------------------------------
# Model building blocks (glue around the Pallas kernels)
# ----------------------------------------------------------------------------
def positional_encoding(d_model, max_len):
    even_i = jnp.arange(0, d_model, 2, dtype=jnp.float32)
    denom = jnp.power(10000.0, even_i / d_model)
    pos = jnp.arange(max_len, dtype=jnp.float32).reshape(max_len, 1)
    even_pe = jnp.sin(pos / denom)
    odd_pe = jnp.cos(pos / denom)
    stacked = jnp.stack([even_pe, odd_pe], axis=2)
    return stacked.reshape(max_len, d_model)


def sentence_embedding(token_ids, emb_table, pos_enc, s_pad):
    # dropout(p=0.1) is identity in eval mode
    B, S = token_ids.shape
    x = jnp.take(emb_table, token_ids, axis=0) + pos_enc[None, :S, :]
    if s_pad != S:
        x = jnp.pad(x, ((0, 0), (0, s_pad - S), (0, 0)))
    return x.astype(jnp.bfloat16)


def encoder_layer(x, p, self_mask, seq_len):
    a = p["attn"]
    q, k, v = pallas_head_proj(x, (a["wq"], a["wk"], a["wv"]),
                               (a["bq"], a["bk"], a["bv"]))
    o = pallas_flash_attention(q, k, v, self_mask, seq_len)
    x = pallas_attn_out_ln(o, a["wo"], a["bo"], x,
                           p["norm1"]["gamma"], p["norm1"]["beta"])
    f = p["ffn"]
    x = pallas_ffn_ln(x, f["w1"], f["b1"], f["w2"], f["b2"], x,
                      p["norm2"]["gamma"], p["norm2"]["beta"])
    return x


def decoder_layer(x_enc, y, p, self_mask, cross_mask, seq_len):
    a = p["self_attn"]
    q, k, v = pallas_head_proj(y, (a["wq"], a["wk"], a["wv"]),
                               (a["bq"], a["bk"], a["bv"]))
    o = pallas_flash_attention(q, k, v, self_mask, seq_len)
    y = pallas_attn_out_ln(o, a["wo"], a["bo"], y,
                           p["norm1"]["gamma"], p["norm1"]["beta"])

    c = p["cross_attn"]
    (q,) = pallas_head_proj(y, (c["wq"],), (c["bq"],))
    k, v = pallas_head_proj(x_enc, (c["wk"], c["wv"]), (c["bk"], c["bv"]))
    o = pallas_flash_attention(q, k, v, cross_mask, seq_len)
    y = pallas_attn_out_ln(o, c["wo"], c["bo"], y,
                           p["norm2"]["gamma"], p["norm2"]["beta"])

    f = p["ffn"]
    y = pallas_ffn_ln(y, f["w1"], f["b1"], f["w2"], f["b2"], y,
                      p["norm3"]["gamma"], p["norm3"]["beta"])
    return y


def transformer_forward(params, en_tokens, kn_tokens,
                        encoder_self_attention_mask=None,
                        decoder_self_attention_mask=None,
                        decoder_cross_attention_mask=None):
    # NOTE: encoder and decoder share max_sequence_length (as in the reference module).
    B, S = en_tokens.shape
    Sp = _pad_seq_len(S)

    def prep_mask(m):
        if m is None:
            return None
        m = m.astype(jnp.bfloat16)           # bf16 mask -> half the HBM traffic
        if Sp != S:
            m = jnp.pad(m, ((0, 0), (0, Sp - S), (0, Sp - S)))
        return m

    enc_mask = prep_mask(encoder_self_attention_mask)
    dec_self_mask = prep_mask(decoder_self_attention_mask)
    dec_cross_mask = prep_mask(decoder_cross_attention_mask)

    # ---- Encoder ----
    x = sentence_embedding(en_tokens, params["enc_emb"], params["pos_enc"], Sp)
    for lp in params["enc_layers"]:
        x = encoder_layer(x, lp, enc_mask, S)

    # ---- Decoder ----
    y = sentence_embedding(kn_tokens, params["dec_emb"], params["pos_enc"], Sp)
    for lp in params["dec_layers"]:
        y = decoder_layer(x, y, lp, dec_self_mask, dec_cross_mask, S)

    # ---- Final projection (logits in f32) ----
    D = params["cfg"]["d_model"]
    V = params["cfg"]["kn_vocab_size"]
    logits = pallas_linear(y.reshape(B * Sp, D), params["final_w"],
                           params["final_b"], out_dtype=jnp.float32)
    return logits.reshape(B, Sp, V)[:, :S, :]


# ----------------------------------------------------------------------------
# Parameter init (weights stored in kernel-ready layouts; matmul operands bf16,
# biases / LN params f32; softmax scale folded into the q projection)
# ----------------------------------------------------------------------------
def init_params(key, d_model, ffn_hidden, num_heads, num_layers,
                max_sequence_length, en_vocab_size, kn_vocab_size):
    head_dim = d_model // num_heads
    q_scale = 1.0 / math.sqrt(head_dim)
    keys = iter(jax.random.split(key, 1024))

    def head_linear(scale=1.0):
        k1, k2 = jax.random.split(next(keys))
        bound = 1.0 / math.sqrt(d_model)
        w = jax.random.uniform(k1, (d_model, num_heads, head_dim),
                               minval=-bound, maxval=bound, dtype=jnp.float32)
        b = jax.random.uniform(k2, (num_heads, 1, head_dim),
                               minval=-bound, maxval=bound, dtype=jnp.float32)
        w = jnp.transpose(w * scale, (1, 0, 2)).astype(jnp.bfloat16)   # (H, D, Dh)
        return w, b * scale

    def out_proj():
        k1, k2 = jax.random.split(next(keys))
        bound = 1.0 / math.sqrt(d_model)
        w = jax.random.uniform(k1, (num_heads, head_dim, d_model),
                               minval=-bound, maxval=bound, dtype=jnp.float32)
        b = jax.random.uniform(k2, (1, d_model),
                               minval=-bound, maxval=bound, dtype=jnp.float32)
        return w.astype(jnp.bfloat16), b

    def dense(fan_in, fan_out):
        k1, k2 = jax.random.split(next(keys))
        bound = 1.0 / math.sqrt(fan_in)
        w = jax.random.uniform(k1, (fan_in, fan_out), minval=-bound, maxval=bound,
                               dtype=jnp.float32).astype(jnp.bfloat16)
        b = jax.random.uniform(k2, (1, fan_out), minval=-bound, maxval=bound,
                               dtype=jnp.float32)
        return w, b

    def attn_params():
        wq, bq = head_linear(scale=q_scale)   # 1/sqrt(Dh) folded into q weights
        wk, bk = head_linear()
        wv, bv = head_linear()
        wo, bo = out_proj()
        return {"wq": wq, "bq": bq, "wk": wk, "bk": bk, "wv": wv, "bv": bv,
                "wo": wo, "bo": bo}

    def ffn_params():
        w1, b1 = dense(d_model, ffn_hidden)
        w2, b2 = dense(ffn_hidden, d_model)
        return {"w1": w1, "b1": b1, "w2": w2, "b2": b2}

    def norm_params():
        return {"gamma": jnp.ones((1, d_model), jnp.float32),
                "beta": jnp.zeros((1, d_model), jnp.float32)}

    enc_layers = [{"attn": attn_params(), "norm1": norm_params(),
                   "ffn": ffn_params(), "norm2": norm_params()}
                  for _ in range(num_layers)]
    dec_layers = [{"self_attn": attn_params(), "norm1": norm_params(),
                   "cross_attn": attn_params(), "norm2": norm_params(),
                   "ffn": ffn_params(), "norm3": norm_params()}
                  for _ in range(num_layers)]

    final_w, final_b = dense(d_model, kn_vocab_size)

    return {
        "cfg": {"num_heads": num_heads, "kn_vocab_size": kn_vocab_size,
                "d_model": d_model},
        "enc_emb": jax.random.normal(next(keys), (en_vocab_size, d_model),
                                     jnp.float32),
        "dec_emb": jax.random.normal(next(keys), (kn_vocab_size, d_model),
                                     jnp.float32),
        "pos_enc": positional_encoding(d_model, max_sequence_length),
        "enc_layers": enc_layers,
        "dec_layers": dec_layers,
        "final_w": final_w,
        "final_b": final_b,
    }


# ----------------------------------------------------------------------------
# Demo
# ----------------------------------------------------------------------------
if __name__ == "__main__":
    d_model = 32
    ffn_hidden = 64
    num_heads = 4
    num_layers = 2
    max_sequence_length = 8
    en_vocab_size = 20
    kn_vocab_size = 24
    batch = 2

    key = jax.random.PRNGKey(0)
    k_par, k_en, k_kn = jax.random.split(key, 3)

    params = init_params(k_par, d_model, ffn_hidden, num_heads, num_layers,
                         max_sequence_length, en_vocab_size, kn_vocab_size)

    # pre-tokenized sentences (batch_tokenize output equivalent)
    en_tokens = jax.random.randint(k_en, (batch, max_sequence_length), 0,
                                   en_vocab_size, dtype=jnp.int32)
    kn_tokens = jax.random.randint(k_kn, (batch, max_sequence_length), 0,
                                   kn_vocab_size, dtype=jnp.int32)

    # decoder self-attention mask: causal, additive (-1e9 on masked positions)
    causal = jnp.tril(jnp.ones((max_sequence_length, max_sequence_length),
                               jnp.float32))
    dec_self_mask = jnp.where(causal > 0, 0.0, NEG_INF)
    dec_self_mask = jnp.broadcast_to(dec_self_mask[None],
                                     (batch, max_sequence_length,
                                      max_sequence_length))

    out = transformer_forward(
        params, en_tokens, kn_tokens,
        encoder_self_attention_mask=None,
        decoder_self_attention_mask=dec_self_mask,
        decoder_cross_attention_mask=None,
    )
    out = jax.block_until_ready(out)

    assert out.shape == (batch, max_sequence_length, kn_vocab_size)
    assert bool(jnp.all(jnp.isfinite(out)))
    print("KERNEL_OK")
</pallas_src>

<mosaic_0001>
module attributes {stable_mosaic.version = 11 : i64} {
  func.func @_head_proj_kernel(%arg0: i32, %arg1: i32, %arg2: memref<1x16x32xbf16, #tpu.memory_space<vmem>>, %arg3: memref<1x32x8xbf16, #tpu.memory_space<vmem>>, %arg4: memref<1x32x8xbf16, #tpu.memory_space<vmem>>, %arg5: memref<1x32x8xbf16, #tpu.memory_space<vmem>>, %arg6: memref<1x1x8xf32, #tpu.memory_space<vmem>>, %arg7: memref<1x1x8xf32, #tpu.memory_space<vmem>>, %arg8: memref<1x1x8xf32, #tpu.memory_space<vmem>>, %arg9: memref<1x1x16x8xbf16, #tpu.memory_space<vmem>>, %arg10: memref<1x1x16x8xbf16, #tpu.memory_space<vmem>>, %arg11: memref<1x1x16x8xbf16, #tpu.memory_space<vmem>>) attributes {dimension_semantics = [#tpu.dimension_semantics<parallel>, #tpu.dimension_semantics<parallel>], iteration_bounds = array<i64: 2, 4>, scalar_prefetch = 0 : i64, scratch_operands = 0 : i64, tpu.core_type = #tpu.core_type<tc>, window_params = [{transform_indices = @transform_0, window_bounds = array<i64: 1, 16, 32>}, {transform_indices = @transform_1, window_bounds = array<i64: 1, 32, 8>}, {transform_indices = @transform_2, window_bounds = array<i64: 1, 32, 8>}, {transform_indices = @transform_3, window_bounds = array<i64: 1, 32, 8>}, {transform_indices = @transform_4, window_bounds = array<i64: 1, 1, 8>}, {transform_indices = @transform_5, window_bounds = array<i64: 1, 1, 8>}, {transform_indices = @transform_6, window_bounds = array<i64: 1, 1, 8>}, {transform_indices = @transform_7, window_bounds = array<i64: 1, 1, 16, 8>}, {transform_indices = @transform_8, window_bounds = array<i64: 1, 1, 16, 8>}, {transform_indices = @transform_9, window_bounds = array<i64: 1, 1, 16, 8>}]} {
    %c0 = arith.constant 0 : index
    %c0_0 = arith.constant 0 : index
    %c0_1 = arith.constant 0 : index
    %0 = vector.load %arg2[%c0, %c0_0, %c0_1] : memref<1x16x32xbf16, #tpu.memory_space<vmem>>, vector<1x16x32xbf16>
    %1 = vector.shape_cast %0 : vector<1x16x32xbf16> to vector<16x32xbf16>
    %c0_2 = arith.constant 0 : index
    %c0_3 = arith.constant 0 : index
    %c0_4 = arith.constant 0 : index
    %2 = vector.load %arg3[%c0_2, %c0_3, %c0_4] : memref<1x32x8xbf16, #tpu.memory_space<vmem>>, vector<1x32x8xbf16>
    %3 = vector.shape_cast %2 : vector<1x32x8xbf16> to vector<32x8xbf16>
    %cst = arith.constant dense<0.000000e+00> : vector<16x8xf32>
    %4 = tpu.matmul %1, %3, %cst {dimension_numbers = #tpu.dot_dimension_numbers<[1], [0], [0], [1], [0, 0, 1, 1], [], []>} : vector<16x32xbf16>, vector<32x8xbf16>, vector<16x8xf32> -> vector<16x8xf32>
    %c0_5 = arith.constant 0 : index
    %c0_6 = arith.constant 0 : index
    %c0_7 = arith.constant 0 : index
    %5 = vector.load %arg6[%c0_5, %c0_6, %c0_7] : memref<1x1x8xf32, #tpu.memory_space<vmem>>, vector<1x1x8xf32>
    %6 = vector.shape_cast %5 : vector<1x1x8xf32> to vector<1x8xf32>
    %7 = vector.broadcast %6 : vector<1x8xf32> to vector<16x8xf32>
    %8 = arith.addf %4, %7 : vector<16x8xf32>
    %9 = arith.truncf %8 : vector<16x8xf32> to vector<16x8xbf16>
    %c0_8 = arith.constant 0 : index
    %c0_9 = arith.constant 0 : index
    %c0_10 = arith.constant 0 : index
    %c0_11 = arith.constant 0 : index
    %10 = vector.load %arg9[%c0_8, %c0_9, %c0_10, %c0_11] : memref<1x1x16x8xbf16, #tpu.memory_space<vmem>>, vector<1x1x16x8xbf16>
    %11 = vector.shape_cast %10 : vector<1x1x16x8xbf16> to vector<16x8xbf16>
    %12 = vector.shape_cast %9 : vector<16x8xbf16> to vector<1x1x16x8xbf16>
    tpu.vector_store %arg9[%c0_8, %c0_9, %c0_10, %c0_11], %12 {strides = array<i32>} : memref<1x1x16x8xbf16, #tpu.memory_space<vmem>>, vector<1x1x16x8xbf16>,
    %c0_12 = arith.constant 0 : index
    %c0_13 = arith.constant 0 : index
    %c0_14 = arith.constant 0 : index
    %13 = vector.load %arg4[%c0_12, %c0_13, %c0_14] : memref<1x32x8xbf16, #tpu.memory_space<vmem>>, vector<1x32x8xbf16>
    %14 = vector.shape_cast %13 : vector<1x32x8xbf16> to vector<32x8xbf16>
    %cst_15 = arith.constant dense<0.000000e+00> : vector<16x8xf32>
    %15 = tpu.matmul %1, %14, %cst_15 {dimension_numbers = #tpu.dot_dimension_numbers<[1], [0], [0], [1], [0, 0, 1, 1], [], []>} : vector<16x32xbf16>, vector<32x8xbf16>, vector<16x8xf32> -> vector<16x8xf32>
    %c0_16 = arith.constant 0 : index
    %c0_17 = arith.constant 0 : index
    %c0_18 = arith.constant 0 : index
    %16 = vector.load %arg7[%c0_16, %c0_17, %c0_18] : memref<1x1x8xf32, #tpu.memory_space<vmem>>, vector<1x1x8xf32>
    %17 = vector.shape_cast %16 : vector<1x1x8xf32> to vector<1x8xf32>
    %18 = vector.broadcast %17 : vector<1x8xf32> to vector<16x8xf32>
    %19 = arith.addf %15, %18 : vector<16x8xf32>
    %20 = arith.truncf %19 : vector<16x8xf32> to vector<16x8xbf16>
    %c0_19 = arith.constant 0 : index
    %c0_20 = arith.constant 0 : index
    %c0_21 = arith.constant 0 : index
    %c0_22 = arith.constant 0 : index
    %21 = vector.load %arg10[%c0_19, %c0_20, %c0_21, %c0_22] : memref<1x1x16x8xbf16, #tpu.memory_space<vmem>>, vector<1x1x16x8xbf16>
    %22 = vector.shape_cast %21 : vector<1x1x16x8xbf16> to vector<16x8xbf16>
    %23 = vector.shape_cast %20 : vector<16x8xbf16> to vector<1x1x16x8xbf16>
    tpu.vector_store %arg10[%c0_19, %c0_20, %c0_21, %c0_22], %23 {strides = array<i32>} : memref<1x1x16x8xbf16, #tpu.memory_space<vmem>>, vector<1x1x16x8xbf16>,
    %c0_23 = arith.constant 0 : index
    %c0_24 = arith.constant 0 : index
    %c0_25 = arith.constant 0 : index
    %24 = vector.load %arg5[%c0_23, %c0_24, %c0_25] : memref<1x32x8xbf16, #tpu.memory_space<vmem>>, vector<1x32x8xbf16>
    %25 = vector.shape_cast %24 : vector<1x32x8xbf16> to vector<32x8xbf16>
    %cst_26 = arith.constant dense<0.000000e+00> : vector<16x8xf32>
    %26 = tpu.matmul %1, %25, %cst_26 {dimension_numbers = #tpu.dot_dimension_numbers<[1], [0], [0], [1], [0, 0, 1, 1], [], []>} : vector<16x32xbf16>, vector<32x8xbf16>, vector<16x8xf32> -> vector<16x8xf32>
    %c0_27 = arith.constant 0 : index
    %c0_28 = arith.constant 0 : index
    %c0_29 = arith.constant 0 : index
    %27 = vector.load %arg8[%c0_27, %c0_28, %c0_29] : memref<1x1x8xf32, #tpu.memory_space<vmem>>, vector<1x1x8xf32>
    %28 = vector.shape_cast %27 : vector<1x1x8xf32> to vector<1x8xf32>
    %29 = vector.broadcast %28 : vector<1x8xf32> to vector<16x8xf32>
    %30 = arith.addf %26, %29 : vector<16x8xf32>
    %31 = arith.truncf %30 : vector<16x8xf32> to vector<16x8xbf16>
    %c0_30 = arith.constant 0 : index
    %c0_31 = arith.constant 0 : index
    %c0_32 = arith.constant 0 : index
    %c0_33 = arith.constant 0 : index
    %32 = vector.load %arg11[%c0_30, %c0_31, %c0_32, %c0_33] : memref<1x1x16x8xbf16, #tpu.memory_space<vmem>>, vector<1x1x16x8xbf16>
    %33 = vector.shape_cast %32 : vector<1x1x16x8xbf16> to vector<16x8xbf16>
    %34 = vector.shape_cast %31 : vector<16x8xbf16> to vector<1x1x16x8xbf16>
    tpu.vector_store %arg11[%c0_30, %c0_31, %c0_32, %c0_33], %34 {strides = array<i32>} : memref<1x1x16x8xbf16, #tpu.memory_space<vmem>>, vector<1x1x16x8xbf16>,
    return
  }
  func.func @transform_0(%arg0: i32, %arg1: i32) -> (i32, i32, i32) {
    %c0_i32 = arith.constant 0 : i32
    %c0_i32_0 = arith.constant 0 : i32
    %c0_i32_1 = arith.constant 0 : i32
    return %arg0, %c0_i32, %c0_i32_0 : i32, i32, i32
  }
  func.func @transform_1(%arg0: i32, %arg1: i32) -> (i32, i32, i32) {
    %c0_i32 = arith.constant 0 : i32
    %c0_i32_0 = arith.constant 0 : i32
    %c0_i32_1 = arith.constant 0 : i32
    return %arg1, %c0_i32, %c0_i32_0 : i32, i32, i32
  }
  func.func @transform_2(%arg0: i32, %arg1: i32) -> (i32, i32, i32) {
    %c0_i32 = arith.constant 0 : i32
    %c0_i32_0 = arith.constant 0 : i32
    %c0_i32_1 = arith.constant 0 : i32
    return %arg1, %c0_i32, %c0_i32_0 : i32, i32, i32
  }
  func.func @transform_3(%arg0: i32, %arg1: i32) -> (i32, i32, i32) {
    %c0_i32 = arith.constant 0 : i32
    %c0_i32_0 = arith.constant 0 : i32
    %c0_i32_1 = arith.constant 0 : i32
    return %arg1, %c0_i32, %c0_i32_0 : i32, i32, i32
  }
  func.func @transform_4(%arg0: i32, %arg1: i32) -> (i32, i32, i32) {
    %c0_i32 = arith.constant 0 : i32
    %c0_i32_0 = arith.constant 0 : i32
    %c0_i32_1 = arith.constant 0 : i32
    return %arg1, %c0_i32, %c0_i32_0 : i32, i32, i32
  }
  func.func @transform_5(%arg0: i32, %arg1: i32) -> (i32, i32, i32) {
    %c0_i32 = arith.constant 0 : i32
    %c0_i32_0 = arith.constant 0 : i32
    %c0_i32_1 = arith.constant 0 : i32
    return %arg1, %c0_i32, %c0_i32_0 : i32, i32, i32
  }
  func.func @transform_6(%arg0: i32, %arg1: i32) -> (i32, i32, i32) {
    %c0_i32 = arith.constant 0 : i32
    %c0_i32_0 = arith.constant 0 : i32
    %c0_i32_1 = arith.constant 0 : i32
    return %arg1, %c0_i32, %c0_i32_0 : i32, i32, i32
  }
  func.func @transform_7(%arg0: i32, %arg1: i32) -> (i32, i32, i32, i32) {
    %c0_i32 = arith.constant 0 : i32
    %c0_i32_0 = arith.constant 0 : i32
    %c0_i32_1 = arith.constant 0 : i32
    return %arg0, %arg1, %c0_i32, %c0_i32_0 : i32, i32, i32, i32
  }
  func.func @transform_8(%arg0: i32, %arg1: i32) -> (i32, i32, i32, i32) {
    %c0_i32 = arith.constant 0 : i32
    %c0_i32_0 = arith.constant 0 : i32
    %c0_i32_1 = arith.constant 0 : i32
    return %arg0, %arg1, %c0_i32, %c0_i32_0 : i32, i32, i32, i32
  }
  func.func @transform_9(%arg0: i32, %arg1: i32) -> (i32, i32, i32, i32) {
    %c0_i32 = arith.constant 0 : i32
    %c0_i32_0 = arith.constant 0 : i32
    %c0_i32_1 = arith.constant 0 : i32
    return %arg0, %arg1, %c0_i32, %c0_i32_0 : i32, i32, i32, i32
  }
}

</mosaic_0001>

<llo_original>
// kernel: tpu_custom_call.1
$region0: #{tpu_custom_call.1}
  #allocation0 [shape = 'u32[]', space=smem, size = 0x4, offset = 0x4, fixed_abs, tag = 'smem constant byte address 0x4 - core index']
  #allocation1 [shape = 'u32[72,128]{1,0:T(1,128)}', space=vmem, size = 0x9000, scoped, tag = 'internal scratch']
  %s0 = inlined_call_operand.vmem [shape: bf16[2,16,32], index: 0, kind: input, shape index: {}]
  %s1 = inlined_call_operand.vmem [shape: bf16[4,32,8], index: 1, kind: input, shape index: {}]
  %s2 = inlined_call_operand.vmem [shape: bf16[4,32,8], index: 2, kind: input, shape index: {}]
  %s3 = inlined_call_operand.vmem [shape: bf16[4,32,8], index: 3, kind: input, shape index: {}]
  %s4 = inlined_call_operand.vmem [shape: f32[4,1,8], index: 4, kind: input, shape index: {}]
  %s5 = inlined_call_operand.vmem [shape: f32[4,1,8], index: 5, kind: input, shape index: {}]
  %s6 = inlined_call_operand.vmem [shape: f32[4,1,8], index: 6, kind: input, shape index: {}]
  %s7 = inlined_call_operand.vmem [shape: bf16[2,4,16,8], index: 7, kind: output, shape index: {0}]
  %s8 = inlined_call_operand.vmem [shape: bf16[2,4,16,8], index: 8, kind: output, shape index: {1}]
  %s9 = inlined_call_operand.vmem [shape: bf16[2,4,16,8], index: 9, kind: output, shape index: {2}]
  %10 = xla_tuple %s7, %s8, %s9
  %s11 = sld [smem:[#allocation0]]
  $region77: #{tpu_custom_call.1} parent=0
    _
  %s13 = ssub.s32 1, %s11
  %s14 = scalar_select 0, %s13, %s11
  loop: start=0, step=1, limit=10
  $region2: #{tpu_custom_call.1} parent=0 // loop_pre_header
    _
  $region3: #{tpu_custom_call.1} parent=0 // loop_header
    %s16 = sphi 0, %s20
    %p17 = scmp.ge.s32.totalorder %s16, 10
    %s23 = sphi 0, %s35
    %s24 = sphi 0, %s31
    %s25 = sphi 0, %s23
    %s26 = sphi 0, %s24
    %s27 = sphi 0, %s25
    %s28 = sphi 0, %s26
    %s38 = sphi 0, %s40
    %s41 = sphi 0, %s38
    %s42 = sphi 0, %s41
    %s58 = sphi 0, %s42
    %s64 = sphi 0, %s66
    %s67 = sphi 0, %s64
    %s68 = sphi 0, %s67
    %s84 = sphi 0, %s68
    %s90 = sphi 0, %s92
    %s93 = sphi 0, %s90
    %s94 = sphi 0, %s93
    %s110 = sphi 0, %s94
    %s116 = sphi 0, %s118
    %s119 = sphi 0, %s116
    %s120 = sphi 0, %s119
    %s136 = sphi 0, %s120
    %s142 = sphi 0, %s144
    %s145 = sphi 0, %s142
    %s146 = sphi 0, %s145
    %s162 = sphi 0, %s146
    %s168 = sphi 0, %s170
    %s171 = sphi 0, %s168
    %s172 = sphi 0, %s171
    %s188 = sphi 0, %s172
    %s194 = sphi 0, %s196
    %s197 = sphi 0, %s194
    %s198 = sphi 0, %s197
    %s214 = sphi 0, %s198
    %s222 = sphi 0, %s224
    %s225 = sphi 0, %s222
    %s226 = sphi 0, %s225
    %s242 = sphi 0, %s226
    %s250 = sphi 0, %s252
    %s253 = sphi 0, %s250
    %s254 = sphi 0, %s253
    %s270 = sphi 0, %s254
    %s278 = sphi 0, %s280
    %s281 = sphi 0, %s278
    %s282 = sphi 0, %s281
    %s298 = sphi 0, %s282
  $region4: #{tpu_custom_call.1} parent=0 // loop_header_branch
    %19 = sbr.rel (%p17) target = $region8
  $region5: #{tpu_custom_call.1} parent=0 // loop_body
    %s21 = ssub.s32 %s16, 1
    %s22 = ssub.s32 %s16, 2
    %s29 = sadd.s32 1, %s24
    %p30 = scmp.ge.s32.totalorder %s29, 4
    %s31 = scalar_select %p30, 0, %s29
    %s32 = sadd.s32 1, %s23
    %s33 = scalar_select %p30, %s32, %s23
    %p34 = scmp.ge.s32.totalorder %s33, 2
    %s35 = scalar_select %p34, 0, %s33
    %s36 = ssub.s32 %s23, %s35
    %p37 = scmp.eq.s32.totalorder %s36, 0
    %s39 = sadd.s32 %s38, 1
    %s40 = scalar_select %p37, %s38, %s39
    %p43 = pneg %p37
    %p44 = scmp.eq.s32.totalorder %s16, 7
    %p45 = por %p43, %p44
    %p46 = scmp.ne.s32.totalorder %s38, %s41
    %p47 = scmp.eq.s32.totalorder %s16, 0
    %p48 = por %p46, %p47
    %p49 = scmp.ne.s32.totalorder %s38, %s41
    %p50 = scmp.eq.s32.totalorder %s21, 7
    %p51 = por %p49, %p50
    %p52 = scmp.ne.s32.totalorder %s41, %s42
    %p53 = scmp.eq.s32.totalorder %s21, 0
    %p54 = por %p52, %p53
    %p55 = scmp.ne.s32.totalorder %s41, %s42
    %p56 = scmp.eq.s32.totalorder %s22, 7
    %p57 = por %p55, %p56
    %p59 = scmp.ne.s32.totalorder %s42, %s58
    %p60 = scmp.eq.s32.totalorder %s22, 0
    %p61 = por %p59, %p60
    %s62 = ssub.s32 %s24, %s31
    %p63 = scmp.eq.s32.totalorder %s62, 0
    %s65 = sadd.s32 %s64, 1
    %s66 = scalar_select %p63, %s64, %s65
    %p69 = pneg %p63
    %p70 = scmp.eq.s32.totalorder %s16, 7
    %p71 = por %p69, %p70
    %p72 = scmp.ne.s32.totalorder %s64, %s67
    %p73 = scmp.eq.s32.totalorder %s16, 0
    %p74 = por %p72, %p73
    %p75 = scmp.ne.s32.totalorder %s64, %s67
    %p76 = scmp.eq.s32.totalorder %s21, 7
    %p77 = por %p75, %p76
    %p78 = scmp.ne.s32.totalorder %s67, %s68
    %p79 = scmp.eq.s32.totalorder %s21, 0
    %p80 = por %p78, %p79
    %p81 = scmp.ne.s32.totalorder %s67, %s68
    %p82 = scmp.eq.s32.totalorder %s22, 7
    %p83 = por %p81, %p82
    %p85 = scmp.ne.s32.totalorder %s68, %s84
    %p86 = scmp.eq.s32.totalorder %s22, 0
    %p87 = por %p85, %p86
    %s88 = ssub.s32 %s24, %s31
    %p89 = scmp.eq.s32.totalorder %s88, 0
    %s91 = sadd.s32 %s90, 1
    %s92 = scalar_select %p89, %s90, %s91
    %p95 = pneg %p89
    %p96 = scmp.eq.s32.totalorder %s16, 7
    %p97 = por %p95, %p96
    %p98 = scmp.ne.s32.totalorder %s90, %s93
    %p99 = scmp.eq.s32.totalorder %s16, 0
    %p100 = por %p98, %p99
    %p101 = scmp.ne.s32.totalorder %s90, %s93
    %p102 = scmp.eq.s32.totalorder %s21, 7
    %p103 = por %p101, %p102
    %p104 = scmp.ne.s32.totalorder %s93, %s94
    %p105 = scmp.eq.s32.totalorder %s21, 0
    %p106 = por %p104, %p105
    %p107 = scmp.ne.s32.totalorder %s93, %s94
    %p108 = scmp.eq.s32.totalorder %s22, 7
    %p109 = por %p107, %p108
    %p111 = scmp.ne.s32.totalorder %s94, %s110
    %p112 = scmp.eq.s32.totalorder %s22, 0
    %p113 = por %p111, %p112
    %s114 = ssub.s32 %s24, %s31
    %p115 = scmp.eq.s32.totalorder %s114, 0
    %s117 = sadd.s32 %s116, 1
    %s118 = scalar_select %p115, %s116, %s117
    %p121 = pneg %p115
    %p122 = scmp.eq.s32.totalorder %s16, 7
    %p123 = por %p121, %p122
    %p124 = scmp.ne.s32.totalorder %s116, %s119
    %p125 = scmp.eq.s32.totalorder %s16, 0
    %p126 = por %p124, %p125
    %p127 = scmp.ne.s32.totalorder %s116, %s119
    %p128 = scmp.eq.s32.totalorder %s21, 7
    %p129 = por %p127, %p128
    %p130 = scmp.ne.s32.totalorder %s119, %s120
    %p131 = scmp.eq.s32.totalorder %s21, 0
    %p132 = por %p130, %p131
    %p133 = scmp.ne.s32.totalorder %s119, %s120
    %p134 = scmp.eq.s32.totalorder %s22, 7
    %p135 = por %p133, %p134
    %p137 = scmp.ne.s32.totalorder %s120, %s136
    %p138 = scmp.eq.s32.totalorder %s22, 0
    %p139 = por %p137, %p138
    %s140 = ssub.s32 %s24, %s31
    %p141 = scmp.eq.s32.totalorder %s140, 0
    %s143 = sadd.s32 %s142, 1
    %s144 = scalar_select %p141, %s142, %s143
    %p147 = pneg %p141
    %p148 = scmp.eq.s32.totalorder %s16, 7
    %p149 = por %p147, %p148
    %p150 = scmp.ne.s32.totalorder %s142, %s145
    %p151 = scmp.eq.s32.totalorder %s16, 0
    %p152 = por %p150, %p151
    %p153 = scmp.ne.s32.totalorder %s142, %s145
    %p154 = scmp.eq.s32.totalorder %s21, 7
    %p155 = por %p153, %p154
    %p156 = scmp.ne.s32.totalorder %s145, %s146
    %p157 = scmp.eq.s32.totalorder %s21, 0
    %p158 = por %p156, %p157
    %p159 = scmp.ne.s32.totalorder %s145, %s146
    %p160 = scmp.eq.s32.totalorder %s22, 7
    %p161 = por %p159, %p160
    %p163 = scmp.ne.s32.totalorder %s146, %s162
    %p164 = scmp.eq.s32.totalorder %s22, 0
    %p165 = por %p163, %p164
    %s166 = ssub.s32 %s24, %s31
    %p167 = scmp.eq.s32.totalorder %s166, 0
    %s169 = sadd.s32 %s168, 1
    %s170 = scalar_select %p167, %s168, %s169
    %p173 = pneg %p167
    %p174 = scmp.eq.s32.totalorder %s16, 7
    %p175 = por %p173, %p174
    %p176 = scmp.ne.s32.totalorder %s168, %s171
    %p177 = scmp.eq.s32.totalorder %s16, 0
    %p178 = por %p176, %p177
    %p179 = scmp.ne.s32.totalorder %s168, %s171
    %p180 = scmp.eq.s32.totalorder %s21, 7
    %p181 = por %p179, %p180
    %p182 = scmp.ne.s32.totalorder %s171, %s172
    %p183 = scmp.eq.s32.totalorder %s21, 0
    %p184 = por %p182, %p183
    %p185 = scmp.ne.s32.totalorder %s171, %s172
    %p186 = scmp.eq.s32.totalorder %s22, 7
    %p187 = por %p185, %p186
    %p189 = scmp.ne.s32.totalorder %s172, %s188
    %p190 = scmp.eq.s32.totalorder %s22, 0
    %p191 = por %p189, %p190
    %s192 = ssub.s32 %s24, %s31
    %p193 = scmp.eq.s32.totalorder %s192, 0
    %s195 = sadd.s32 %s194, 1
    %s196 = scalar_select %p193, %s194, %s195
    %p199 = pneg %p193
    %p200 = scmp.eq.s32.totalorder %s16, 7
    %p201 = por %p199, %p200
    %p202 = scmp.ne.s32.totalorder %s194, %s197
    %p203 = scmp.eq.s32.totalorder %s16, 0
    %p204 = por %p202, %p203
    %p205 = scmp.ne.s32.totalorder %s194, %s197
    %p206 = scmp.eq.s32.totalorder %s21, 7
    %p207 = por %p205, %p206
    %p208 = scmp.ne.s32.totalorder %s197, %s198
    %p209 = scmp.eq.s32.totalorder %s21, 0
    %p210 = por %p208, %p209
    %p211 = scmp.ne.s32.totalorder %s197, %s198
    %p212 = scmp.eq.s32.totalorder %s22, 7
    %p213 = por %p211, %p212
    %p215 = scmp.ne.s32.totalorder %s198, %s214
    %p216 = scmp.eq.s32.totalorder %s22, 0
    %p217 = por %p215, %p216
    %s218 = ssub.s32 %s23, %s35
    %s219 = ssub.s32 %s24, %s31
    %s220 = sor.u32 %s218, %s219
    %p221 = scmp.eq.s32.totalorder %s220, 0
    %s223 = sadd.s32 %s222, 1
    %s224 = scalar_select %p221, %s222, %s223
    %p227 = pneg %p221
    %p228 = scmp.eq.s32.totalorder %s16, 7
    %p229 = por %p227, %p228
    %p230 = scmp.ne.s32.totalorder %s222, %s225
    %p231 = scmp.eq.s32.totalorder %s16, 0
    %p232 = por %p230, %p231
    %p233 = scmp.ne.s32.totalorder %s222, %s225
    %p234 = scmp.eq.s32.totalorder %s21, 7
    %p235 = por %p233, %p234
    %p236 = scmp.ne.s32.totalorder %s225, %s226
    %p237 = scmp.eq.s32.totalorder %s21, 0
    %p238 = por %p236, %p237
    %p239 = scmp.ne.s32.totalorder %s225, %s226
    %p240 = scmp.eq.s32.totalorder %s22, 7
    %p241 = por %p239, %p240
    %p243 = scmp.ne.s32.totalorder %s226, %s242
    %p244 = scmp.eq.s32.totalorder %s22, 0
    %p245 = por %p243, %p244
    %s246 = ssub.s32 %s23, %s35
    %s247 = ssub.s32 %s24, %s31
    %s248 = sor.u32 %s246, %s247
    %p249 = scmp.eq.s32.totalorder %s248, 0
    %s251 = sadd.s32 %s250, 1
    %s252 = scalar_select %p249, %s250, %s251
    %p255 = pneg %p249
    %p256 = scmp.eq.s32.totalorder %s16, 7
    %p257 = por %p255, %p256
    %p258 = scmp.ne.s32.totalorder %s250, %s253
    %p259 = scmp.eq.s32.totalorder %s16, 0
    %p260 = por %p258, %p259
    %p261 = scmp.ne.s32.totalorder %s250, %s253
    %p262 = scmp.eq.s32.totalorder %s21, 7
    %p263 = por %p261, %p262
    %p264 = scmp.ne.s32.totalorder %s253, %s254
    %p265 = scmp.eq.s32.totalorder %s21, 0
    %p266 = por %p264, %p265
    %p267 = scmp.ne.s32.totalorder %s253, %s254
    %p268 = scmp.eq.s32.totalorder %s22, 7
    %p269 = por %p267, %p268
    %p271 = scmp.ne.s32.totalorder %s254, %s270
    %p272 = scmp.eq.s32.totalorder %s22, 0
    %p273 = por %p271, %p272
    %s274 = ssub.s32 %s23, %s35
    %s275 = ssub.s32 %s24, %s31
    %s276 = sor.u32 %s274, %s275
    %p277 = scmp.eq.s32.totalorder %s276, 0
    %s279 = sadd.s32 %s278, 1
    %s280 = scalar_select %p277, %s278, %s279
    %p283 = pneg %p277
    %p284 = scmp.eq.s32.totalorder %s16, 7
    %p285 = por %p283, %p284
    %p286 = scmp.ne.s32.totalorder %s278, %s281
    %p287 = scmp.eq.s32.totalorder %s16, 0
    %p288 = por %p286, %p287
    %p289 = scmp.ne.s32.totalorder %s278, %s281
    %p290 = scmp.eq.s32.totalorder %s21, 7
    %p291 = por %p289, %p290
    %p292 = scmp.ne.s32.totalorder %s281, %s282
    %p293 = scmp.eq.s32.totalorder %s21, 0
    %p294 = por %p292, %p293
    %p295 = scmp.ne.s32.totalorder %s281, %s282
    %p296 = scmp.eq.s32.totalorder %s22, 7
    %p297 = por %p295, %p296
    %p299 = scmp.ne.s32.totalorder %s282, %s298
    %p300 = scmp.eq.s32.totalorder %s22, 0
    %p301 = por %p299, %p300
    %p302 = scmp.le.s32.totalorder 1, %s16
    %p303 = scmp.lt.s32.totalorder %s16, 9
    %p304 = pnand %p302, %p303
    %p305 = pneg %p304
    // Predicated region
    $region9: #{tpu_custom_call.1} parent=5 // pred_check
      _
    $region10: #{tpu_custom_call.1} parent=5 // pred_check_branch
      %307 = sbr.rel (%p304) target = $region12
    $region11: #{tpu_custom_call.1} parent=5 // pred_region
      %s308 = ssub.s32 %s16, 1
    $region12: #{tpu_custom_call.1} parent=5 // pred_fallthru
      _
    %p309 = scmp.lt.s32.totalorder %s16, 8
    // Predicated region
    $region13: #{tpu_custom_call.1} parent=5 // pred_check
      %p310 = pneg %p309
    $region14: #{tpu_custom_call.1} parent=5 // pred_check_branch
      %312 = sbr.rel (%p310) target = $region16
    $region15: #{tpu_custom_call.1} parent=5 // pred_region
      // Predicated region
      $region17: #{tpu_custom_call.1} parent=15 // pred_check
        %p313 = pneg %p48
      $region18: #{tpu_custom_call.1} parent=15 // pred_check_branch
        %315 = sbr.rel (%p313) target = $region20
      $region19: #{tpu_custom_call.1} parent=15 // pred_region
        %p316 = scmp.lt.s32.totalorder %s23, 1
        %s317 = scalar_select %p316, %s23, 1
        %s318 = smul.addr %s317, 2
        %s319 = smul.addr %s318, 4
        %s320 = scalar_lea.vmem %s0, %s319
      $region20: #{tpu_custom_call.1} parent=15 // pred_fallthru
        _
      // Predicated region
      $region21: #{tpu_custom_call.1} parent=15 // pred_check
        %p321 = pneg %p74
      $region22: #{tpu_custom_call.1} parent=15 // pred_check_branch
        %323 = sbr.rel (%p321) target = $region24
      $region23: #{tpu_custom_call.1} parent=15 // pred_region
        %p324 = scmp.lt.s32.totalorder %s24, 3
        %s325 = scalar_select %p324, %s24, 3
        %s326 = smul.addr %s325, 4
        %s327 = smul.addr %s326, 4
        %s328 = scalar_lea.vmem %s1, %s327
      $region24: #{tpu_custom_call.1} parent=15 // pred_fallthru
        _
      // Predicated region
      $region25: #{tpu_custom_call.1} parent=15 // pred_check
        %p329 = pneg %p100
      $region26: #{tpu_custom_call.1} parent=15 // pred_check_branch
        %331 = sbr.rel (%p329) target = $region28
      $region27: #{tpu_custom_call.1} parent=15 // pred_region
        %p332 = scmp.lt.s32.totalorder %s24, 3
        %s333 = scalar_select %p332, %s24, 3
        %s334 = smul.addr %s333, 4
        %s335 = smul.addr %s334, 4
        %s336 = scalar_lea.vmem %s2, %s335
      $region28: #{tpu_custom_call.1} parent=15 // pred_fallthru
        _
      // Predicated region
      $region29: #{tpu_custom_call.1} parent=15 // pred_check
        %p337 = pneg %p126
      $region30: #{tpu_custom_call.1} parent=15 // pred_check_branch
        %339 = sbr.rel (%p337) target = $region32
      $region31: #{tpu_custom_call.1} parent=15 // pred_region
        %p340 = scmp.lt.s32.totalorder %s24, 3
        %s341 = scalar_select %p340, %s24, 3
        %s342 = smul.addr %s341, 4
        %s343 = smul.addr %s342, 4
        %s344 = scalar_lea.vmem %s3, %s343
      $region32: #{tpu_custom_call.1} parent=15 // pred_fallthru
        _
      // Predicated region
      $region33: #{tpu_custom_call.1} parent=15 // pred_check
        %p345 = pneg %p152
      $region34: #{tpu_custom_call.1} parent=15 // pred_check_branch
        %347 = sbr.rel (%p345) target = $region36
      $region35: #{tpu_custom_call.1} parent=15 // pred_region
        %p348 = scmp.lt.s32.totalorder %s24, 3
        %s349 = scalar_select %p348, %s24, 3
        %s350 = scalar_lea.vmem %s4, %s349
      $region36: #{tpu_custom_call.1} parent=15 // pred_fallthru
        _
      // Predicated region
      $region37: #{tpu_custom_call.1} parent=15 // pred_check
        %p351 = pneg %p178
      $region38: #{tpu_custom_call.1} parent=15 // pred_check_branch
        %353 = sbr.rel (%p351) target = $region40
      $region39: #{tpu_custom_call.1} parent=15 // pred_region
        %p354 = scmp.lt.s32.totalorder %s24, 3
        %s355 = scalar_select %p354, %s24, 3
        %s356 = scalar_lea.vmem %s5, %s355
      $region40: #{tpu_custom_call.1} parent=15 // pred_fallthru
        _
      // Predicated region
      $region41: #{tpu_custom_call.1} parent=15 // pred_check
        %p357 = pneg %p204
      $region42: #{tpu_custom_call.1} parent=15 // pred_check_branch
        %359 = sbr.rel (%p357) target = $region44
      $region43: #{tpu_custom_call.1} parent=15 // pred_region
        %p360 = scmp.lt.s32.totalorder %s24, 3
        %s361 = scalar_select %p360, %s24, 3
        %s362 = scalar_lea.vmem %s6, %s361
      $region44: #{tpu_custom_call.1} parent=15 // pred_fallthru
        _
    $region16: #{tpu_custom_call.1} parent=5 // pred_fallthru
      _
    %p363 = scmp.le.s32.totalorder 1, %s16
    %p364 = scmp.lt.s32.totalorder %s16, 9
    %p365 = pnand %p363, %p364
    %p366 = pneg %p365
    // Predicated region
    $region45: #{tpu_custom_call.1} parent=5 // pred_check
      _
    $region46: #{tpu_custom_call.1} parent=5 // pred_check_branch
      %368 = sbr.rel (%p365) target = $region48
    $region47: #{tpu_custom_call.1} parent=5 // pred_region
      %s369 = ssub.s32 %s16, 1
      %p370 = scmp.lt.s32.totalorder %s25, 1
      %s371 = scalar_select %p370, %s25, 1
      %s372 = smul.addr %s371, 2
      %s373 = smul.addr %s372, 4
      %s374 = scalar_lea.vmem %s0, %s373
      %p375 = pneg %p54
      %p376 = pneg %p51
      %p377 = scmp.lt.s32.totalorder %s26, 3
      %s378 = scalar_select %p377, %s26, 3
      %s379 = smul.addr %s378, 4
      %s380 = smul.addr %s379, 4
      %s381 = scalar_lea.vmem %s1, %s380
      %p382 = pneg %p80
      %p383 = pneg %p77
      %p384 = scmp.lt.s32.totalorder %s26, 3
      %s385 = scalar_select %p384, %s26, 3
      %s386 = smul.addr %s385, 4
      %s387 = smul.addr %s386, 4
      %s388 = scalar_lea.vmem %s2, %s387
      %p389 = pneg %p106
      %p390 = pneg %p103
      %p391 = scmp.lt.s32.totalorder %s26, 3
      %s392 = scalar_select %p391, %s26, 3
      %s393 = smul.addr %s392, 4
      %s394 = smul.addr %s393, 4
      %s395 = scalar_lea.vmem %s3, %s394
      %p396 = pneg %p132
      %p397 = pneg %p129
      %p398 = scmp.lt.s32.totalorder %s26, 3
      %s399 = scalar_select %p398, %s26, 3
      %s400 = scalar_lea.vmem %s4, %s399
      %p401 = pneg %p158
      %p402 = pneg %p155
      %p403 = scmp.lt.s32.totalorder %s26, 3
      %s404 = scalar_select %p403, %s26, 3
      %s405 = scalar_lea.vmem %s5, %s404
      %p406 = pneg %p184
      %p407 = pneg %p181
      %p408 = scmp.lt.s32.totalorder %s26, 3
      %s409 = scalar_select %p408, %s26, 3
      %s410 = scalar_lea.vmem %s6, %s409
      %p411 = pneg %p210
      %p412 = pneg %p207
      %p413 = pneg %p238
      %p414 = pneg %p235
      %p415 = scmp.lt.s32.totalorder %s25, 1
      %s416 = scalar_select %p415, %s25, 1
      %p417 = scmp.lt.s32.totalorder %s26, 3
      %s418 = scalar_select %p417, %s26, 3
      %s419 = smul.addr %s418, 2
      %s420 = smul.addr %s416, 8
      %s421 = sadd.s32 %s419, %s420
      %s422 = smul.addr %s421, 4
      %s423 = scalar_lea.vmem %s7, %s422
      %p424 = pneg %p266
      %p425 = pneg %p263
      %p426 = scmp.lt.s32.totalorder %s25, 1
      %s427 = scalar_select %p426, %s25, 1
      %p428 = scmp.lt.s32.totalorder %s26, 3
      %s429 = scalar_select %p428, %s26, 3
      %s430 = smul.addr %s429, 2
      %s431 = smul.addr %s427, 8
      %s432 = sadd.s32 %s430, %s431
      %s433 = smul.addr %s432, 4
      %s434 = scalar_lea.vmem %s8, %s433
      %p435 = pneg %p294
      %p436 = pneg %p291
      %p437 = scmp.lt.s32.totalorder %s25, 1
      %s438 = scalar_select %p437, %s25, 1
      %p439 = scmp.lt.s32.totalorder %s26, 3
      %s440 = scalar_select %p439, %s26, 3
      %s441 = smul.addr %s440, 2
      %s442 = smul.addr %s438, 8
      %s443 = sadd.s32 %s441, %s442
      %s444 = smul.addr %s443, 4
      %s445 = scalar_lea.vmem %s9, %s444
      %p446 = scmp.lt.s32.totalorder %s25, 1
      %s447 = scalar_select %p446, %s25, 1
      %s448 = smul.addr %s447, 2
      %s449 = smul.addr %s448, 4
      %s450 = scalar_lea.vmem %s0, %s449
      %p451 = scmp.lt.s32.totalorder %s26, 3
      %s452 = scalar_select %p451, %s26, 3
      %s453 = smul.addr %s452, 4
      %s454 = smul.addr %s453, 4
      %s455 = scalar_lea.vmem %s1, %s454
      %p456 = scmp.lt.s32.totalorder %s26, 3
      %s457 = scalar_select %p456, %s26, 3
      %s458 = smul.addr %s457, 4
      %s459 = smul.addr %s458, 4
      %s460 = scalar_lea.vmem %s2, %s459
      %p461 = scmp.lt.s32.totalorder %s26, 3
      %s462 = scalar_select %p461, %s26, 3
      %s463 = smul.addr %s462, 4
      %s464 = smul.addr %s463, 4
      %s465 = scalar_lea.vmem %s3, %s464
      %p466 = scmp.lt.s32.totalorder %s26, 3
      %s467 = scalar_select %p466, %s26, 3
      %s468 = scalar_lea.vmem %s4, %s467
      %p469 = scmp.lt.s32.totalorder %s26, 3
      %s470 = scalar_select %p469, %s26, 3
      %s471 = scalar_lea.vmem %s5, %s470
      %p472 = scmp.lt.s32.totalorder %s26, 3
      %s473 = scalar_select %p472, %s26, 3
      %s474 = scalar_lea.vmem %s6, %s473
      %p475 = scmp.lt.s32.totalorder %s25, 1
      %s476 = scalar_select %p475, %s25, 1
      %p477 = scmp.lt.s32.totalorder %s26, 3
      %s478 = scalar_select %p477, %s26, 3
      %s479 = smul.addr %s478, 2
      %s480 = smul.addr %s476, 8
      %s481 = sadd.s32 %s479, %s480
      %s482 = smul.addr %s481, 4
      %s483 = scalar_lea.vmem %s7, %s482
      %p484 = scmp.lt.s32.totalorder %s25, 1
      %s485 = scalar_select %p484, %s25, 1
      %p486 = scmp.lt.s32.totalorder %s26, 3
      %s487 = scalar_select %p486, %s26, 3
      %s488 = smul.addr %s487, 2
      %s489 = smul.addr %s485, 8
      %s490 = sadd.s32 %s488, %s489
      %s491 = smul.addr %s490, 4
      %s492 = scalar_lea.vmem %s8, %s491
      %p493 = scmp.lt.s32.totalorder %s25, 1
      %s494 = scalar_select %p493, %s25, 1
      %p495 = scmp.lt.s32.totalorder %s26, 3
      %s496 = scalar_select %p495, %s26, 3
      %s497 = smul.addr %s496, 2
      %s498 = smul.addr %s494, 8
      %s499 = sadd.s32 %s497, %s498
      %s500 = smul.addr %s499, 4
      %s501 = scalar_lea.vmem %s9, %s500
      %v503 = vld [vmem:[%s450] sm:$0xf]
      %v504 = vld [vmem:[%s450 + $0x4] sm:$0xf]
      %v505 = vld [vmem:[%s455] sm:$0xf]
      %v506 = vld [vmem:[%s455 + $0x4] sm:$0xf]
      %v507 = vld [vmem:[%s455 + $0x8] sm:$0xf]
      %v508 = vld [vmem:[%s455 + $0xc] sm:$0xf]
      %v509 = vld [vmem:[%s468] sm:$0x1]
      %v511 = vperm.slane %v509, 0
      %v515 = vunpack.c.l.b16 %v503
      %v516 = vunpack.c.l.b16 %v504
      %v517 = vpack.c.b16 %v516, %v515
      %v522 = vunpack.c.l.b16 %v505
      %v523 = vunpack.c.l.b16 %v506
      %v524 = vunpack.c.l.b16 %v507
      %v525 = vunpack.c.l.b16 %v508
      %v526 = vpack.c.b16 %v523, %v522
      %v527 = vpack.c.b16 %v525, %v524
      %vm530 = vcmask 261120
      %v532 = vsel %vm530, %v517, 0
      %534 = vmatpush.bf16.msra.mxu0 0
      %535 = vmatpush.bf16.msra.mxu0 0
      %536 = vmatpush.bf16.msra.mxu0 0
      %537 = vmatpush.bf16.msra.mxu0 0
      %538 = vmatpush.bf16.msra.mxu0 0
      %539 = vmatpush.bf16.msra.mxu0 0
      %540 = vmatpush.bf16.msra.mxu0 %v527
      %541 = vmatpush.bf16.msra.mxu0 %v526
      %542 = vmatmul.bf16.gmra.mxu0 %v532
      %v543 = vpop.f32.mrf.mxu0
      %v544 = vadd.f32 %v511, %v543
      %v545 = vpop.f32.mrf.mxu0
      %v546 = vadd.f32 %v511, %v545
      %547 = vdwg.mxu0
      %v548 = vpack.c.bf16 %v544, %v544
      %v549 = vpack.c.bf16 %v546, %v546
      %vm550 = vcmask 60416
      %551 = vst.msk [vmem:[%s483] sm:$0xf] %vm550, %v548
      %552 = vst.msk [vmem:[%s483 + $0x4] sm:$0xf] %vm550, %v549
      %v553 = vld [vmem:[%s460] sm:$0xf]
      %v554 = vld [vmem:[%s460 + $0x4] sm:$0xf]
      %v555 = vld [vmem:[%s460 + $0x8] sm:$0xf]
      %v556 = vld [vmem:[%s460 + $0xc] sm:$0xf]
      %v557 = vld [vmem:[%s471] sm:$0x1]
      %v559 = vperm.slane %v557, 0
      %v565 = vunpack.c.l.b16 %v553
      %v566 = vunpack.c.l.b16 %v554
      %v567 = vunpack.c.l.b16 %v555
      %v568 = vunpack.c.l.b16 %v556
      %v569 = vpack.c.b16 %v566, %v565
      %v570 = vpack.c.b16 %v568, %v567
      %573 = vmatpush.bf16.msra.mxu0 0
      %574 = vmatpush.bf16.msra.mxu0 0
      %575 = vmatpush.bf16.msra.mxu0 0
      %576 = vmatpush.bf16.msra.mxu0 0
      %577 = vmatpush.bf16.msra.mxu0 0
      %578 = vmatpush.bf16.msra.mxu0 0
      %579 = vmatpush.bf16.msra.mxu0 %v570
      %580 = vmatpush.bf16.msra.mxu0 %v569
      %581 = vmatmul.bf16.gmra.mxu0 %v532
      %v582 = vpop.f32.mrf.mxu0
      %v583 = vadd.f32 %v559, %v582
      %v584 = vpop.f32.mrf.mxu0
      %v585 = vadd.f32 %v559, %v584
      %586 = vdwg.mxu0
      %v587 = vpack.c.bf16 %v583, %v583
      %v588 = vpack.c.bf16 %v585, %v585
      %589 = vst.msk [vmem:[%s492] sm:$0xf] %vm550, %v587
      %590 = vst.msk [vmem:[%s492 + $0x4] sm:$0xf] %vm550, %v588
      %v591 = vld [vmem:[%s465] sm:$0xf]
      %v592 = vld [vmem:[%s465 + $0x4] sm:$0xf]
      %v593 = vld [vmem:[%s465 + $0x8] sm:$0xf]
      %v594 = vld [vmem:[%s465 + $0xc] sm:$0xf]
      %v595 = vld [vmem:[%s474] sm:$0x1]
      %v597 = vperm.slane %v595, 0
      %v603 = vunpack.c.l.b16 %v591
      %v604 = vunpack.c.l.b16 %v592
      %v605 = vunpack.c.l.b16 %v593
      %v606 = vunpack.c.l.b16 %v594
      %v607 = vpack.c.b16 %v604, %v603
      %v608 = vpack.c.b16 %v606, %v605
      %611 = vmatpush.bf16.msra.mxu0 0
      %612 = vmatpush.bf16.msra.mxu0 0
      %613 = vmatpush.bf16.msra.mxu0 0
      %614 = vmatpush.bf16.msra.mxu0 0
      %615 = vmatpush.bf16.msra.mxu0 0
      %616 = vmatpush.bf16.msra.mxu0 0
      %617 = vmatpush.bf16.msra.mxu0 %v608
      %618 = vmatpush.bf16.msra.mxu0 %v607
      %619 = vmatmul.bf16.gmra.mxu0 %v532
      %v620 = vpop.f32.mrf.mxu0
      %v621 = vadd.f32 %v597, %v620
      %v622 = vpop.f32.mrf.mxu0
      %v623 = vadd.f32 %v597, %v622
      %624 = vdwg.mxu0
      %v625 = vpack.c.bf16 %v621, %v621
      %v626 = vpack.c.bf16 %v623, %v623
      %627 = vst.msk [vmem:[%s501] sm:$0xf] %vm550, %v625
      %628 = vst.msk [vmem:[%s501 + $0x4] sm:$0xf] %vm550, %v626
      %p629 = scmp.lt.s32.totalorder %s25, 1
      %s630 = scalar_select %p629, %s25, 1
      %p631 = scmp.lt.s32.totalorder %s26, 3
      %s632 = scalar_select %p631, %s26, 3
      %s633 = smul.addr %s632, 2
      %s634 = smul.addr %s630, 8
      %s635 = sadd.s32 %s633, %s634
      %s636 = smul.addr %s635, 4
      %s637 = scalar_lea.vmem %s7, %s636
      %p638 = scmp.lt.s32.totalorder %s25, 1
      %s639 = scalar_select %p638, %s25, 1
      %p640 = scmp.lt.s32.totalorder %s26, 3
      %s641 = scalar_select %p640, %s26, 3
      %s642 = smul.addr %s641, 2
      %s643 = smul.addr %s639, 8
      %s644 = sadd.s32 %s642, %s643
      %s645 = smul.addr %s644, 4
      %s646 = scalar_lea.vmem %s8, %s645
      %p647 = scmp.lt.s32.totalorder %s25, 1
      %s648 = scalar_select %p647, %s25, 1
      %p649 = scmp.lt.s32.totalorder %s26, 3
      %s650 = scalar_select %p649, %s26, 3
      %s651 = smul.addr %s650, 2
      %s652 = smul.addr %s648, 8
      %s653 = sadd.s32 %s651, %s652
      %s654 = smul.addr %s653, 4
      %s655 = scalar_lea.vmem %s9, %s654
      // Predicated region
      $region49: #{tpu_custom_call.1} parent=47 // pred_check
        %p656 = pneg %p235
      $region50: #{tpu_custom_call.1} parent=47 // pred_check_branch
        %658 = sbr.rel (%p656) target = $region52
      $region51: #{tpu_custom_call.1} parent=47 // pred_region
        _
      $region52: #{tpu_custom_call.1} parent=47 // pred_fallthru
        _
      // Predicated region
      $region53: #{tpu_custom_call.1} parent=47 // pred_check
        %p659 = pneg %p263
      $region54: #{tpu_custom_call.1} parent=47 // pred_check_branch
        %661 = sbr.rel (%p659) target = $region56
      $region55: #{tpu_custom_call.1} parent=47 // pred_region
        _
      $region56: #{tpu_custom_call.1} parent=47 // pred_fallthru
        _
      // Predicated region
      $region57: #{tpu_custom_call.1} parent=47 // pred_check
        %p662 = pneg %p291
      $region58: #{tpu_custom_call.1} parent=47 // pred_check_branch
        %664 = sbr.rel (%p662) target = $region60
      $region59: #{tpu_custom_call.1} parent=47 // pred_region
        _
      $region60: #{tpu_custom_call.1} parent=47 // pred_fallthru
        _
    $region48: #{tpu_custom_call.1} parent=5 // pred_fallthru
      _
    %p665 = scmp.le.s32.totalorder 2, %s16
    // Predicated region
    $region61: #{tpu_custom_call.1} parent=5 // pred_check
      %p666 = pneg %p665
    $region62: #{tpu_custom_call.1} parent=5 // pred_check_branch
      %668 = sbr.rel (%p666) target = $region64
    $region63: #{tpu_custom_call.1} parent=5 // pred_region
      %s669 = ssub.s32 %s16, 2
      // Predicated region
      $region65: #{tpu_custom_call.1} parent=63 // pred_check
        %p670 = pneg %p241
      $region66: #{tpu_custom_call.1} parent=63 // pred_check_branch
        %672 = sbr.rel (%p670) target = $region68
      $region67: #{tpu_custom_call.1} parent=63 // pred_region
        %p673 = scmp.lt.s32.totalorder %s27, 1
        %s674 = scalar_select %p673, %s27, 1
        %p675 = scmp.lt.s32.totalorder %s28, 3
        %s676 = scalar_select %p675, %s28, 3
        %s677 = smul.addr %s676, 2
        %s678 = smul.addr %s674, 8
        %s679 = sadd.s32 %s677, %s678
        %s680 = smul.addr %s679, 4
        %s681 = scalar_lea.vmem %s7, %s680
      $region68: #{tpu_custom_call.1} parent=63 // pred_fallthru
        _
      // Predicated region
      $region69: #{tpu_custom_call.1} parent=63 // pred_check
        %p682 = pneg %p269
      $region70: #{tpu_custom_call.1} parent=63 // pred_check_branch
        %684 = sbr.rel (%p682) target = $region72
      $region71: #{tpu_custom_call.1} parent=63 // pred_region
        %p685 = scmp.lt.s32.totalorder %s27, 1
        %s686 = scalar_select %p685, %s27, 1
        %p687 = scmp.lt.s32.totalorder %s28, 3
        %s688 = scalar_select %p687, %s28, 3
        %s689 = smul.addr %s688, 2
        %s690 = smul.addr %s686, 8
        %s691 = sadd.s32 %s689, %s690
        %s692 = smul.addr %s691, 4
        %s693 = scalar_lea.vmem %s8, %s692
      $region72: #{tpu_custom_call.1} parent=63 // pred_fallthru
        _
      // Predicated region
      $region73: #{tpu_custom_call.1} parent=63 // pred_check
        %p694 = pneg %p297
      $region74: #{tpu_custom_call.1} parent=63 // pred_check_branch
        %696 = sbr.rel (%p694) target = $region76
      $region75: #{tpu_custom_call.1} parent=63 // pred_region
        %p697 = scmp.lt.s32.totalorder %s27, 1
        %s698 = scalar_select %p697, %s27, 1
        %p699 = scmp.lt.s32.totalorder %s28, 3
        %s700 = scalar_select %p699, %s28, 3
        %s701 = smul.addr %s700, 2
        %s702 = smul.addr %s698, 8
        %s703 = sadd.s32 %s701, %s702
        %s704 = smul.addr %s703, 4
        %s705 = scalar_lea.vmem %s9, %s704
      $region76: #{tpu_custom_call.1} parent=63 // pred_fallthru
        _
    $region64: #{tpu_custom_call.1} parent=5 // pred_fallthru
      _
  $region6: #{tpu_custom_call.1} parent=0 // loop_footer
    %s20 = sadd.s32 1, %s16
  $region7: #{tpu_custom_call.1} parent=0 // loop_footer_branch
    %15 = sbr.rel target = $region3
  $region8: #{tpu_custom_call.1} parent=0 // loop_exit
    _

</llo_original>
